<compile_context>
chip_gen: v7x
topology: tpu7x:2x2x1
jax: 0.10.0
libtpu: 0.0.40
codegen_flags: <defaults>
</compile_context>

<pallas_src>
import math

import jax
import jax.numpy as jnp
from jax import lax
from jax.experimental import pallas as pl
from jax.experimental.pallas import tpu as pltpu


NEG_INF = -1e9          # additive causal-mask value (matches GPT-2 convention)
LN_EPS = 1e-5
GELU_C = math.sqrt(2.0 / math.pi)
VMEM_LIMIT_BYTES = 64 * 1024 * 1024   # > 16/32 MiB scoped defaults, <= v7x physical


def _layer_norm(v, w, b):
    # PyTorch F.layer_norm semantics: biased variance, eps=1e-5, f32 stats
    mu = jnp.mean(v, axis=-1, keepdims=True)
    var = jnp.mean((v - mu) ** 2, axis=-1, keepdims=True)
    return (v - mu) * lax.rsqrt(var + LN_EPS) * w + b


def _const_spec(shape):
    """BlockSpec for a grid-invariant (weight / bias) operand.

    The block index never changes, so double-buffering only wastes VMEM;
    single-buffer it when the installed Pallas supports pipeline_mode.
    """
    zeros = (0,) * len(shape)
    index_map = lambda *_: zeros
    try:
        return pl.BlockSpec(shape, index_map, pipeline_mode=pl.Buffered(1))
    except Exception:                       # older Pallas: fall back to default
        return pl.BlockSpec(shape, index_map)


# --------------------- pass 1: LN1 + QKV projection ---------------------
def make_qkv_kernel(n_head: int, n_embd: int, scale: float):
    C = n_embd
    hd = C // n_head

    def kernel(x_ref, ln1_w_ref, ln1_b_ref, w_attn_ref, b_attn_ref,
               kv_ref, q_hm_ref, k_hm_ref, v_hm_ref):
        x = x_ref[0]                                           # (tq, C) f32
        ln1 = _layer_norm(x, ln1_w_ref[...], ln1_b_ref[...])   # f32
        qkv = jnp.dot(ln1.astype(jnp.bfloat16), w_attn_ref[...],
                      preferred_element_type=jnp.float32) + b_attn_ref[...]
        # kv cache = cat([k, v], dim=2): two sliced stores, no concat buffer
        kv_ref[0, :, :C] = qkv[:, C:2 * C].astype(kv_ref.dtype)
        kv_ref[0, :, C:] = qkv[:, 2 * C:].astype(kv_ref.dtype)
        # head-major bf16 streams for the attention pass (relayout paid once
        # here instead of per kv step); attention scale folded into q once
        for h in range(n_head):
            lo = h * hd
            q_hm_ref[0, h] = (qkv[:, lo:lo + hd] * scale).astype(q_hm_ref.dtype)
            k_hm_ref[0, h] = qkv[:, C + lo:C + lo + hd].astype(k_hm_ref.dtype)
            v_hm_ref[0, h] = qkv[:, 2 * C + lo:2 * C + lo + hd].astype(v_hm_ref.dtype)

    return kernel


# ---------- pass 2: flash attention + c_proj + first residual ----------
def make_attn_kernel(n_head: int, n_embd: int, tq: int, tk: int):
    C = n_embd
    hd = C // n_head
    assert tq == tk, "diagonal-tile mask assumes square attention tiles"

    def kernel(x_ref, q_ref, k_ref, v_ref, w_aproj_ref, b_aproj_ref,
               x1_ref, m_sc, l_sc, acc_sc, yo_sc):
        qi = pl.program_id(1)
        ki = pl.program_id(2)
        nk = pl.num_programs(2)

        @pl.when(ki == 0)
        def _():
            m_sc[...] = jnp.full(m_sc.shape, -1e30, m_sc.dtype)
            l_sc[...] = jnp.zeros(l_sc.shape, l_sc.dtype)
            acc_sc[...] = jnp.zeros(acc_sc.shape, acc_sc.dtype)

        def online_update(apply_mask):
            # all heads in one batched contraction over hd: (NH,tq,hd)x(NH,tk,hd)
            s = lax.dot_general(
                q_ref[0], k_ref[0],
                dimension_numbers=(((2,), (2,)), ((0,), (0,))),
                preferred_element_type=jnp.float32)            # (NH, tq, tk)
            if apply_mask:
                # Only the diagonal tile straddles the causal boundary; since
                # tq == tk the global offsets cancel and local iota suffices.
                row = lax.broadcasted_iota(jnp.int32, (1, tq, tk), 1)
                col = lax.broadcasted_iota(jnp.int32, (1, tq, tk), 2)
                s = jnp.where(row >= col, s, NEG_INF)
            m_prev = m_sc[...]
            m_new = jnp.maximum(m_prev, jnp.max(s, axis=-1, keepdims=True))
            alpha = jnp.exp(m_prev - m_new)
            p = jnp.exp(s - m_new)
            l_sc[...] = alpha * l_sc[...] + jnp.sum(p, axis=-1, keepdims=True)
            acc_sc[...] = alpha * acc_sc[...] + lax.dot_general(
                p.astype(jnp.bfloat16), v_ref[0],
                dimension_numbers=(((2,), (1,)), ((0,), (0,))),
                preferred_element_type=jnp.float32)
            m_sc[...] = m_new

        # strictly-below-diagonal tiles: no mask work in the steady state
        @pl.when(ki < qi)
        def _():
            online_update(apply_mask=False)

        # diagonal tile: build the causal mask in-kernel (no (T,T) mask DMA)
        @pl.when(ki == qi)
        def _():
            online_update(apply_mask=True)

        @pl.when(ki == nk - 1)
        def _():
            # normalized per-head outputs -> one (tq, C) bf16 slab -> single
            # K=C c_proj matmul (full MXU contraction, one result drain)
            o = acc_sc[...] * pl.reciprocal(l_sc[...], approx=True)
            for h in range(n_head):
                yo_sc[:, h * hd:(h + 1) * hd] = o[h].astype(yo_sc.dtype)
            attn = jnp.dot(yo_sc[...], w_aproj_ref[...],
                           preferred_element_type=jnp.float32) + b_aproj_ref[...]
            x1_ref[0] = (x_ref[0] + attn).astype(x1_ref.dtype)

    return kernel


# -------------- pass 3: LN2 + MLP + second residual --------------
def make_mlp_kernel(n_embd: int):
    def kernel(x1_ref, ln2_w_ref, ln2_b_ref, w_fc_ref, b_fc_ref,
               w_mproj_ref, b_mproj_ref, y_ref):
        x1 = x1_ref[0]                                          # (tq, C) f32
        ln2 = _layer_norm(x1, ln2_w_ref[...], ln2_b_ref[...])
        h1 = jnp.dot(ln2.astype(jnp.bfloat16), w_fc_ref[...],
                     preferred_element_type=jnp.float32) + b_fc_ref[...]
        cube = h1 * h1 * h1
        g = 0.5 * h1 * (1.0 + jnp.tanh(GELU_C * (h1 + 0.044715 * cube)))
        mlp = jnp.dot(g.astype(jnp.bfloat16), w_mproj_ref[...],
                      preferred_element_type=jnp.float32) + b_mproj_ref[...]
        y_ref[0] = (x1 + mlp).astype(y_ref.dtype)

    return kernel


def block_forward(x, params, n_head, *, seq_tile=None):
    """x: (B, T, C). Returns (y, kv_cache) like Block.forward (causal mask)."""
    B, T, C = x.shape
    hd = C // n_head
    scale = 1.0 / math.sqrt(hd)
    if seq_tile is None:
        seq_tile = min(T, 256)   # sweep 256/512 on v6e (128 MiB VMEM)
    assert T % seq_tile == 0, "T must be divisible by seq_tile"
    nt = T // seq_tile

    # bf16 weight operands (MXU peak dtype on v5e/v6e/v7x, half the VMEM/HBM
    # traffic); biases and LayerNorm params stay f32, accumulation is f32.
    w_attn = params["w_attn"].astype(jnp.bfloat16)
    w_aproj = params["w_aproj"].astype(jnp.bfloat16)
    w_fc = params["w_fc"].astype(jnp.bfloat16)
    w_mproj = params["w_mproj"].astype(jnp.bfloat16)

    params2d = pltpu.CompilerParams(
        dimension_semantics=("parallel", "parallel"),
        vmem_limit_bytes=VMEM_LIMIT_BYTES)

    # ---------------- pass 1: LN1 + QKV projection ----------------
    kv, q_hm, k_hm, v_hm = pl.pallas_call(
        make_qkv_kernel(n_head, C, scale),
        grid=(B, nt),
        in_specs=[
            pl.BlockSpec((1, seq_tile, C), lambda b, t: (b, t, 0)),
            _const_spec(params["ln1_w"].shape),
            _const_spec(params["ln1_b"].shape),
            _const_spec(w_attn.shape),
            _const_spec(params["b_attn"].shape),
        ],
        out_specs=[
            pl.BlockSpec((1, seq_tile, 2 * C), lambda b, t: (b, t, 0)),
            pl.BlockSpec((1, n_head, seq_tile, hd), lambda b, t: (b, 0, t, 0)),
            pl.BlockSpec((1, n_head, seq_tile, hd), lambda b, t: (b, 0, t, 0)),
            pl.BlockSpec((1, n_head, seq_tile, hd), lambda b, t: (b, 0, t, 0)),
        ],
        out_shape=[
            jax.ShapeDtypeStruct((B, T, 2 * C), x.dtype),            # kv cache
            jax.ShapeDtypeStruct((B, n_head, T, hd), jnp.bfloat16),  # q (scaled)
            jax.ShapeDtypeStruct((B, n_head, T, hd), jnp.bfloat16),  # k
            jax.ShapeDtypeStruct((B, n_head, T, hd), jnp.bfloat16),  # v
        ],
        compiler_params=params2d,
    )(x, params["ln1_w"], params["ln1_b"], w_attn, params["b_attn"])

    # -------- pass 2: flash attention + c_proj + first residual --------
    x1 = pl.pallas_call(
        make_attn_kernel(n_head, C, seq_tile, seq_tile),
        grid=(B, nt, nt),
        in_specs=[
            pl.BlockSpec((1, seq_tile, C), lambda b, qi, ki: (b, qi, 0)),              # x
            pl.BlockSpec((1, n_head, seq_tile, hd), lambda b, qi, ki: (b, 0, qi, 0)),  # q
            pl.BlockSpec((1, n_head, seq_tile, hd), lambda b, qi, ki: (b, 0, ki, 0)),  # k
            pl.BlockSpec((1, n_head, seq_tile, hd), lambda b, qi, ki: (b, 0, ki, 0)),  # v
            _const_spec(w_aproj.shape),
            _const_spec(params["b_aproj"].shape),
        ],
        out_specs=pl.BlockSpec((1, seq_tile, C), lambda b, qi, ki: (b, qi, 0)),
        out_shape=jax.ShapeDtypeStruct((B, T, C), x.dtype),
        scratch_shapes=[
            pltpu.VMEM((n_head, seq_tile, 1), jnp.float32),     # running max
            pltpu.VMEM((n_head, seq_tile, 1), jnp.float32),     # running sum
            pltpu.VMEM((n_head, seq_tile, hd), jnp.float32),    # output acc
            pltpu.VMEM((seq_tile, C), jnp.bfloat16),            # head-concat slab
        ],
        compiler_params=pltpu.CompilerParams(
            dimension_semantics=("parallel", "parallel", "arbitrary"),
            vmem_limit_bytes=VMEM_LIMIT_BYTES),
    )(x, q_hm, k_hm, v_hm, w_aproj, params["b_aproj"])

    # ------------- pass 3: LN2 + MLP + second residual -------------
    y = pl.pallas_call(
        make_mlp_kernel(C),
        grid=(B, nt),
        in_specs=[
            pl.BlockSpec((1, seq_tile, C), lambda b, t: (b, t, 0)),
            _const_spec(params["ln2_w"].shape),
            _const_spec(params["ln2_b"].shape),
            _const_spec(w_fc.shape),
            _const_spec(params["b_fc"].shape),
            _const_spec(w_mproj.shape),
            _const_spec(params["b_mproj"].shape),
        ],
        out_specs=pl.BlockSpec((1, seq_tile, C), lambda b, t: (b, t, 0)),
        out_shape=jax.ShapeDtypeStruct((B, T, C), x.dtype),
        compiler_params=params2d,
    )(x1, params["ln2_w"], params["ln2_b"], w_fc, params["b_fc"],
      w_mproj, params["b_mproj"])

    return y, kv


# ----------------- pure-JAX reference (for correctness check) -----------------
def ref_block(x, params, n_head):
    def ln(v, w, b):
        mu = jnp.mean(v, axis=-1, keepdims=True)
        var = jnp.mean((v - mu) ** 2, axis=-1, keepdims=True)
        return (v - mu) * lax.rsqrt(var + LN_EPS) * w + b

    B, T, C = x.shape
    hd = C // n_head
    causal = jnp.tril(jnp.ones((T, T), jnp.bool_))
    mask = jnp.where(causal, 0.0, NEG_INF).astype(jnp.float32)

    ln1 = ln(x, params["ln1_w"], params["ln1_b"])
    qkv = ln1 @ params["w_attn"] + params["b_attn"]
    q, k, v = jnp.split(qkv, 3, axis=-1)
    kv = jnp.concatenate([k, v], axis=-1)

    def split_heads(t):
        return t.reshape(B, T, n_head, hd).transpose(0, 2, 1, 3)

    qh, kh, vh = split_heads(q), split_heads(k), split_heads(v)
    att = (qh @ kh.transpose(0, 1, 3, 2)) * (1.0 / math.sqrt(hd)) + mask
    att = jax.nn.softmax(att, axis=-1)
    y = (att @ vh).transpose(0, 2, 1, 3).reshape(B, T, C)
    attn_out = y @ params["w_aproj"] + params["b_aproj"]
    x1 = x + attn_out

    ln2 = ln(x1, params["ln2_w"], params["ln2_b"])
    h1 = ln2 @ params["w_fc"] + params["b_fc"]
    g = 0.5 * h1 * (1.0 + jnp.tanh(GELU_C * (h1 + 0.044715 * h1 ** 3)))
    mlp_out = g @ params["w_mproj"] + params["b_mproj"]
    return x1 + mlp_out, kv


if __name__ == "__main__":
    B, T, C, NH = 2, 32, 32, 4      # batch, seq, n_embd, n_head
    SEQ_TILE = 16                   # exercises the multi-tile online-softmax path

    key = jax.random.PRNGKey(0)
    ks = jax.random.split(key, 16)

    def w(k, shape, s=0.02):
        return (s * jax.random.normal(k, shape)).astype(jnp.float32)

    params = {
        "ln1_w": jnp.ones((1, C), jnp.float32),
        "ln1_b": jnp.zeros((1, C), jnp.float32),
        "w_attn": w(ks[0], (C, 3 * C)),
        "b_attn": w(ks[1], (1, 3 * C)),
        "w_aproj": w(ks[2], (C, C)),
        "b_aproj": w(ks[3], (1, C)),
        "ln2_w": jnp.ones((1, C), jnp.float32),
        "ln2_b": jnp.zeros((1, C), jnp.float32),
        "w_fc": w(ks[4], (C, 4 * C)),
        "b_fc": w(ks[5], (1, 4 * C)),
        "w_mproj": w(ks[6], (4 * C, C)),
        "b_mproj": w(ks[7], (1, C)),
    }

    x = jax.random.normal(ks[8], (B, T, C), jnp.float32)

    y, kv_cache = block_forward(x, params, NH, seq_tile=SEQ_TILE)
    y = jax.block_until_ready(y)
    kv_cache = jax.block_until_ready(kv_cache)

    y_ref, kv_ref_out = ref_block(x, params, NH)
    # bf16 matmul operands (f32 accumulate) -> compare at 2e-3
    assert jnp.allclose(y, y_ref, atol=2e-3, rtol=2e-3), "output mismatch"
    assert jnp.allclose(kv_cache, kv_ref_out, atol=2e-3, rtol=2e-3), "kv cache mismatch"

    print("KERNEL_OK")
</pallas_src>

<mosaic_0001>
module attributes {stable_mosaic.version = 11 : i64} {
  func.func @kernel(%arg0: i32, %arg1: i32, %arg2: memref<1x16x32xf32, #tpu.memory_space<vmem>>, %arg3: memref<1x32xf32, #tpu.memory_space<vmem>>, %arg4: memref<1x32xf32, #tpu.memory_space<vmem>>, %arg5: memref<32x96xbf16, #tpu.memory_space<vmem>>, %arg6: memref<1x96xf32, #tpu.memory_space<vmem>>, %arg7: memref<1x16x64xf32, #tpu.memory_space<vmem>>, %arg8: memref<1x4x16x8xbf16, #tpu.memory_space<vmem>>, %arg9: memref<1x4x16x8xbf16, #tpu.memory_space<vmem>>, %arg10: memref<1x4x16x8xbf16, #tpu.memory_space<vmem>>) attributes {dimension_semantics = [#tpu.dimension_semantics<parallel>, #tpu.dimension_semantics<parallel>], iteration_bounds = array<i64: 2, 2>, scalar_prefetch = 0 : i64, scratch_operands = 0 : i64, tpu.core_type = #tpu.core_type<tc>, window_params = [{transform_indices = @transform_0, window_bounds = array<i64: 1, 16, 32>}, {pipeline_mode = #tpu.pipeline_mode<synchronous>, transform_indices = @transform_1, window_bounds = array<i64: 1, 32>}, {pipeline_mode = #tpu.pipeline_mode<synchronous>, transform_indices = @transform_2, window_bounds = array<i64: 1, 32>}, {pipeline_mode = #tpu.pipeline_mode<synchronous>, transform_indices = @transform_3, window_bounds = array<i64: 32, 96>}, {pipeline_mode = #tpu.pipeline_mode<synchronous>, transform_indices = @transform_4, window_bounds = array<i64: 1, 96>}, {transform_indices = @transform_5, window_bounds = array<i64: 1, 16, 64>}, {transform_indices = @transform_6, window_bounds = array<i64: 1, 4, 16, 8>}, {transform_indices = @transform_7, window_bounds = array<i64: 1, 4, 16, 8>}, {transform_indices = @transform_8, window_bounds = array<i64: 1, 4, 16, 8>}]} {
    %c0 = arith.constant 0 : index
    %c0_0 = arith.constant 0 : index
    %c0_1 = arith.constant 0 : index
    %0 = vector.load %arg2[%c0, %c0_0, %c0_1] : memref<1x16x32xf32, #tpu.memory_space<vmem>>, vector<1x16x32xf32>
    %1 = vector.shape_cast %0 : vector<1x16x32xf32> to vector<16x32xf32>
    %c0_2 = arith.constant 0 : index
    %c0_3 = arith.constant 0 : index
    %2 = vector.load %arg3[%c0_2, %c0_3] : memref<1x32xf32, #tpu.memory_space<vmem>>, vector<1x32xf32>
    %c0_4 = arith.constant 0 : index
    %c0_5 = arith.constant 0 : index
    %3 = vector.load %arg4[%c0_4, %c0_5] : memref<1x32xf32, #tpu.memory_space<vmem>>, vector<1x32xf32>
    %cst = arith.constant dense<0.000000e+00> : vector<16xf32>
    %4 = vector.multi_reduction <add>, %1, %cst [1] : vector<16x32xf32> to vector<16xf32>
    %5 = vector.shape_cast %4 : vector<16xf32> to vector<16x1xf32>
    %cst_6 = arith.constant 3.200000e+01 : f32
    %6 = vector.broadcast %cst_6 : f32 to vector<16x1xf32>
    %7 = arith.divf %5, %6 : vector<16x1xf32>
    %8 = vector.broadcast %7 : vector<16x1xf32> to vector<16x32xf32>
    %9 = arith.subf %1, %8 : vector<16x32xf32>
    %10 = arith.mulf %9, %9 : vector<16x32xf32>
    %cst_7 = arith.constant dense<0.000000e+00> : vector<16xf32>
    %11 = vector.multi_reduction <add>, %10, %cst_7 [1] : vector<16x32xf32> to vector<16xf32>
    %12 = vector.shape_cast %11 : vector<16xf32> to vector<16x1xf32>
    %cst_8 = arith.constant 3.200000e+01 : f32
    %13 = vector.broadcast %cst_8 : f32 to vector<16x1xf32>
    %14 = arith.divf %12, %13 : vector<16x1xf32>
    %15 = vector.broadcast %7 : vector<16x1xf32> to vector<16x32xf32>
    %16 = arith.subf %1, %15 : vector<16x32xf32>
    %cst_9 = arith.constant 9.99999974E-6 : f32
    %17 = vector.broadcast %cst_9 : f32 to vector<16x1xf32>
    %18 = arith.addf %14, %17 : vector<16x1xf32>
    %19 = math.rsqrt %18 : vector<16x1xf32>
    %20 = vector.broadcast %19 : vector<16x1xf32> to vector<16x32xf32>
    %21 = arith.mulf %16, %20 : vector<16x32xf32>
    %22 = vector.broadcast %2 : vector<1x32xf32> to vector<16x32xf32>
    %23 = arith.mulf %21, %22 : vector<16x32xf32>
    %24 = vector.broadcast %3 : vector<1x32xf32> to vector<16x32xf32>
    %25 = arith.addf %23, %24 : vector<16x32xf32>
    %26 = arith.truncf %25 : vector<16x32xf32> to vector<16x32xbf16>
    %c0_10 = arith.constant 0 : index
    %c0_11 = arith.constant 0 : index
    %27 = vector.load %arg5[%c0_10, %c0_11] : memref<32x96xbf16, #tpu.memory_space<vmem>>, vector<32x96xbf16>
    %cst_12 = arith.constant dense<0.000000e+00> : vector<16x96xf32>
    %28 = tpu.matmul %26, %27, %cst_12 {dimension_numbers = #tpu.dot_dimension_numbers<[1], [0], [0], [1], [0, 0, 1, 1], [], []>} : vector<16x32xbf16>, vector<32x96xbf16>, vector<16x96xf32> -> vector<16x96xf32>
    %c0_13 = arith.constant 0 : index
    %c0_14 = arith.constant 0 : index
    %29 = vector.load %arg6[%c0_13, %c0_14] : memref<1x96xf32, #tpu.memory_space<vmem>>, vector<1x96xf32>
    %30 = vector.broadcast %29 : vector<1x96xf32> to vector<16x96xf32>
    %31 = arith.addf %28, %30 : vector<16x96xf32>
    %32 = vector.extract_strided_slice %31 {offsets = [0, 32], sizes = [16, 32], strides = [1, 1]} : vector<16x96xf32> to vector<16x32xf32>
    %c0_15 = arith.constant 0 : index
    %c0_16 = arith.constant 0 : index
    %c0_17 = arith.constant 0 : index
    %33 = vector.load %arg7[%c0_15, %c0_16, %c0_17] : memref<1x16x64xf32, #tpu.memory_space<vmem>>, vector<1x16x32xf32>
    %34 = vector.shape_cast %33 : vector<1x16x32xf32> to vector<16x32xf32>
    %35 = vector.shape_cast %32 : vector<16x32xf32> to vector<1x16x32xf32>
    tpu.vector_store %arg7[%c0_15, %c0_16, %c0_17], %35 {strides = array<i32>} : memref<1x16x64xf32, #tpu.memory_space<vmem>>, vector<1x16x32xf32>,
    %36 = vector.extract_strided_slice %31 {offsets = [0, 64], sizes = [16, 32], strides = [1, 1]} : vector<16x96xf32> to vector<16x32xf32>
    %c0_18 = arith.constant 0 : index
    %c0_19 = arith.constant 0 : index
    %c32 = arith.constant 32 : index
    %37 = vector.load %arg7[%c0_18, %c0_19, %c32] : memref<1x16x64xf32, #tpu.memory_space<vmem>>, vector<1x16x32xf32>
    %38 = vector.shape_cast %37 : vector<1x16x32xf32> to vector<16x32xf32>
    %39 = vector.shape_cast %36 : vector<16x32xf32> to vector<1x16x32xf32>
    tpu.vector_store %arg7[%c0_18, %c0_19, %c32], %39 {strides = array<i32>} : memref<1x16x64xf32, #tpu.memory_space<vmem>>, vector<1x16x32xf32>,
    %40 = vector.extract_strided_slice %31 {offsets = [0, 0], sizes = [16, 8], strides = [1, 1]} : vector<16x96xf32> to vector<16x8xf32>
    %cst_20 = arith.constant 0.353553385 : f32
    %41 = vector.broadcast %cst_20 : f32 to vector<16x8xf32>
    %42 = arith.mulf %40, %41 : vector<16x8xf32>
    %43 = arith.truncf %42 : vector<16x8xf32> to vector<16x8xbf16>
    %c0_21 = arith.constant 0 : index
    %c0_22 = arith.constant 0 : index
    %c0_23 = arith.constant 0 : index
    %c0_24 = arith.constant 0 : index
    %44 = vector.load %arg8[%c0_21, %c0_22, %c0_23, %c0_24] : memref<1x4x16x8xbf16, #tpu.memory_space<vmem>>, vector<1x1x16x8xbf16>
    %45 = vector.shape_cast %44 : vector<1x1x16x8xbf16> to vector<16x8xbf16>
    %46 = vector.shape_cast %43 : vector<16x8xbf16> to vector<1x1x16x8xbf16>
    tpu.vector_store %arg8[%c0_21, %c0_22, %c0_23, %c0_24], %46 {strides = array<i32>} : memref<1x4x16x8xbf16, #tpu.memory_space<vmem>>, vector<1x1x16x8xbf16>,
    %47 = vector.extract_strided_slice %31 {offsets = [0, 32], sizes = [16, 8], strides = [1, 1]} : vector<16x96xf32> to vector<16x8xf32>
    %48 = arith.truncf %47 : vector<16x8xf32> to vector<16x8xbf16>
    %c0_25 = arith.constant 0 : index
    %c0_26 = arith.constant 0 : index
    %c0_27 = arith.constant 0 : index
    %c0_28 = arith.constant 0 : index
    %49 = vector.load %arg9[%c0_25, %c0_26, %c0_27, %c0_28] : memref<1x4x16x8xbf16, #tpu.memory_space<vmem>>, vector<1x1x16x8xbf16>
    %50 = vector.shape_cast %49 : vector<1x1x16x8xbf16> to vector<16x8xbf16>
    %51 = vector.shape_cast %48 : vector<16x8xbf16> to vector<1x1x16x8xbf16>
    tpu.vector_store %arg9[%c0_25, %c0_26, %c0_27, %c0_28], %51 {strides = array<i32>} : memref<1x4x16x8xbf16, #tpu.memory_space<vmem>>, vector<1x1x16x8xbf16>,
    %52 = vector.extract_strided_slice %31 {offsets = [0, 64], sizes = [16, 8], strides = [1, 1]} : vector<16x96xf32> to vector<16x8xf32>
    %53 = arith.truncf %52 : vector<16x8xf32> to vector<16x8xbf16>
    %c0_29 = arith.constant 0 : index
    %c0_30 = arith.constant 0 : index
    %c0_31 = arith.constant 0 : index
    %c0_32 = arith.constant 0 : index
    %54 = vector.load %arg10[%c0_29, %c0_30, %c0_31, %c0_32] : memref<1x4x16x8xbf16, #tpu.memory_space<vmem>>, vector<1x1x16x8xbf16>
    %55 = vector.shape_cast %54 : vector<1x1x16x8xbf16> to vector<16x8xbf16>
    %56 = vector.shape_cast %53 : vector<16x8xbf16> to vector<1x1x16x8xbf16>
    tpu.vector_store %arg10[%c0_29, %c0_30, %c0_31, %c0_32], %56 {strides = array<i32>} : memref<1x4x16x8xbf16, #tpu.memory_space<vmem>>, vector<1x1x16x8xbf16>,
    %57 = vector.extract_strided_slice %31 {offsets = [0, 8], sizes = [16, 8], strides = [1, 1]} : vector<16x96xf32> to vector<16x8xf32>
    %cst_33 = arith.constant 0.353553385 : f32
    %58 = vector.broadcast %cst_33 : f32 to vector<16x8xf32>
    %59 = arith.mulf %57, %58 : vector<16x8xf32>
    %60 = arith.truncf %59 : vector<16x8xf32> to vector<16x8xbf16>
    %c0_34 = arith.constant 0 : index
    %c1 = arith.constant 1 : index
    %c0_35 = arith.constant 0 : index
    %c0_36 = arith.constant 0 : index
    %61 = vector.load %arg8[%c0_34, %c1, %c0_35, %c0_36] : memref<1x4x16x8xbf16, #tpu.memory_space<vmem>>, vector<1x1x16x8xbf16>
    %62 = vector.shape_cast %61 : vector<1x1x16x8xbf16> to vector<16x8xbf16>
    %63 = vector.shape_cast %60 : vector<16x8xbf16> to vector<1x1x16x8xbf16>
    tpu.vector_store %arg8[%c0_34, %c1, %c0_35, %c0_36], %63 {strides = array<i32>} : memref<1x4x16x8xbf16, #tpu.memory_space<vmem>>, vector<1x1x16x8xbf16>,
    %64 = vector.extract_strided_slice %31 {offsets = [0, 40], sizes = [16, 8], strides = [1, 1]} : vector<16x96xf32> to vector<16x8xf32>
    %65 = arith.truncf %64 : vector<16x8xf32> to vector<16x8xbf16>
    %c0_37 = arith.constant 0 : index
    %c1_38 = arith.constant 1 : index
    %c0_39 = arith.constant 0 : index
    %c0_40 = arith.constant 0 : index
    %66 = vector.load %arg9[%c0_37, %c1_38, %c0_39, %c0_40] : memref<1x4x16x8xbf16, #tpu.memory_space<vmem>>, vector<1x1x16x8xbf16>
    %67 = vector.shape_cast %66 : vector<1x1x16x8xbf16> to vector<16x8xbf16>
    %68 = vector.shape_cast %65 : vector<16x8xbf16> to vector<1x1x16x8xbf16>
    tpu.vector_store %arg9[%c0_37, %c1_38, %c0_39, %c0_40], %68 {strides = array<i32>} : memref<1x4x16x8xbf16, #tpu.memory_space<vmem>>, vector<1x1x16x8xbf16>,
    %69 = vector.extract_strided_slice %31 {offsets = [0, 72], sizes = [16, 8], strides = [1, 1]} : vector<16x96xf32> to vector<16x8xf32>
    %70 = arith.truncf %69 : vector<16x8xf32> to vector<16x8xbf16>
    %c0_41 = arith.constant 0 : index
    %c1_42 = arith.constant 1 : index
    %c0_43 = arith.constant 0 : index
    %c0_44 = arith.constant 0 : index
    %71 = vector.load %arg10[%c0_41, %c1_42, %c0_43, %c0_44] : memref<1x4x16x8xbf16, #tpu.memory_space<vmem>>, vector<1x1x16x8xbf16>
    %72 = vector.shape_cast %71 : vector<1x1x16x8xbf16> to vector<16x8xbf16>
    %73 = vector.shape_cast %70 : vector<16x8xbf16> to vector<1x1x16x8xbf16>
    tpu.vector_store %arg10[%c0_41, %c1_42, %c0_43, %c0_44], %73 {strides = array<i32>} : memref<1x4x16x8xbf16, #tpu.memory_space<vmem>>, vector<1x1x16x8xbf16>,
    %74 = vector.extract_strided_slice %31 {offsets = [0, 16], sizes = [16, 8], strides = [1, 1]} : vector<16x96xf32> to vector<16x8xf32>
    %cst_45 = arith.constant 0.353553385 : f32
    %75 = vector.broadcast %cst_45 : f32 to vector<16x8xf32>
    %76 = arith.mulf %74, %75 : vector<16x8xf32>
    %77 = arith.truncf %76 : vector<16x8xf32> to vector<16x8xbf16>
    %c0_46 = arith.constant 0 : index
    %c2 = arith.constant 2 : index
    %c0_47 = arith.constant 0 : index
    %c0_48 = arith.constant 0 : index
    %78 = vector.load %arg8[%c0_46, %c2, %c0_47, %c0_48] : memref<1x4x16x8xbf16, #tpu.memory_space<vmem>>, vector<1x1x16x8xbf16>
    %79 = vector.shape_cast %78 : vector<1x1x16x8xbf16> to vector<16x8xbf16>
    %80 = vector.shape_cast %77 : vector<16x8xbf16> to vector<1x1x16x8xbf16>
    tpu.vector_store %arg8[%c0_46, %c2, %c0_47, %c0_48], %80 {strides = array<i32>} : memref<1x4x16x8xbf16, #tpu.memory_space<vmem>>, vector<1x1x16x8xbf16>,
    %81 = vector.extract_strided_slice %31 {offsets = [0, 48], sizes = [16, 8], strides = [1, 1]} : vector<16x96xf32> to vector<16x8xf32>
    %82 = arith.truncf %81 : vector<16x8xf32> to vector<16x8xbf16>
    %c0_49 = arith.constant 0 : index
    %c2_50 = arith.constant 2 : index
    %c0_51 = arith.constant 0 : index
    %c0_52 = arith.constant 0 : index
    %83 = vector.load %arg9[%c0_49, %c2_50, %c0_51, %c0_52] : memref<1x4x16x8xbf16, #tpu.memory_space<vmem>>, vector<1x1x16x8xbf16>
    %84 = vector.shape_cast %83 : vector<1x1x16x8xbf16> to vector<16x8xbf16>
    %85 = vector.shape_cast %82 : vector<16x8xbf16> to vector<1x1x16x8xbf16>
    tpu.vector_store %arg9[%c0_49, %c2_50, %c0_51, %c0_52], %85 {strides = array<i32>} : memref<1x4x16x8xbf16, #tpu.memory_space<vmem>>, vector<1x1x16x8xbf16>,
    %86 = vector.extract_strided_slice %31 {offsets = [0, 80], sizes = [16, 8], strides = [1, 1]} : vector<16x96xf32> to vector<16x8xf32>
    %87 = arith.truncf %86 : vector<16x8xf32> to vector<16x8xbf16>
    %c0_53 = arith.constant 0 : index
    %c2_54 = arith.constant 2 : index
    %c0_55 = arith.constant 0 : index
    %c0_56 = arith.constant 0 : index
    %88 = vector.load %arg10[%c0_53, %c2_54, %c0_55, %c0_56] : memref<1x4x16x8xbf16, #tpu.memory_space<vmem>>, vector<1x1x16x8xbf16>
    %89 = vector.shape_cast %88 : vector<1x1x16x8xbf16> to vector<16x8xbf16>
    %90 = vector.shape_cast %87 : vector<16x8xbf16> to vector<1x1x16x8xbf16>
    tpu.vector_store %arg10[%c0_53, %c2_54, %c0_55, %c0_56], %90 {strides = array<i32>} : memref<1x4x16x8xbf16, #tpu.memory_space<vmem>>, vector<1x1x16x8xbf16>,
    %91 = vector.extract_strided_slice %31 {offsets = [0, 24], sizes = [16, 8], strides = [1, 1]} : vector<16x96xf32> to vector<16x8xf32>
    %cst_57 = arith.constant 0.353553385 : f32
    %92 = vector.broadcast %cst_57 : f32 to vector<16x8xf32>
    %93 = arith.mulf %91, %92 : vector<16x8xf32>
    %94 = arith.truncf %93 : vector<16x8xf32> to vector<16x8xbf16>
    %c0_58 = arith.constant 0 : index
    %c3 = arith.constant 3 : index
    %c0_59 = arith.constant 0 : index
    %c0_60 = arith.constant 0 : index
    %95 = vector.load %arg8[%c0_58, %c3, %c0_59, %c0_60] : memref<1x4x16x8xbf16, #tpu.memory_space<vmem>>, vector<1x1x16x8xbf16>
    %96 = vector.shape_cast %95 : vector<1x1x16x8xbf16> to vector<16x8xbf16>
    %97 = vector.shape_cast %94 : vector<16x8xbf16> to vector<1x1x16x8xbf16>
    tpu.vector_store %arg8[%c0_58, %c3, %c0_59, %c0_60], %97 {strides = array<i32>} : memref<1x4x16x8xbf16, #tpu.memory_space<vmem>>, vector<1x1x16x8xbf16>,
    %98 = vector.extract_strided_slice %31 {offsets = [0, 56], sizes = [16, 8], strides = [1, 1]} : vector<16x96xf32> to vector<16x8xf32>
    %99 = arith.truncf %98 : vector<16x8xf32> to vector<16x8xbf16>
    %c0_61 = arith.constant 0 : index
    %c3_62 = arith.constant 3 : index
    %c0_63 = arith.constant 0 : index
    %c0_64 = arith.constant 0 : index
    %100 = vector.load %arg9[%c0_61, %c3_62, %c0_63, %c0_64] : memref<1x4x16x8xbf16, #tpu.memory_space<vmem>>, vector<1x1x16x8xbf16>
    %101 = vector.shape_cast %100 : vector<1x1x16x8xbf16> to vector<16x8xbf16>
    %102 = vector.shape_cast %99 : vector<16x8xbf16> to vector<1x1x16x8xbf16>
    tpu.vector_store %arg9[%c0_61, %c3_62, %c0_63, %c0_64], %102 {strides = array<i32>} : memref<1x4x16x8xbf16, #tpu.memory_space<vmem>>, vector<1x1x16x8xbf16>,
    %103 = vector.extract_strided_slice %31 {offsets = [0, 88], sizes = [16, 8], strides = [1, 1]} : vector<16x96xf32> to vector<16x8xf32>
    %104 = arith.truncf %103 : vector<16x8xf32> to vector<16x8xbf16>
    %c0_65 = arith.constant 0 : index
    %c3_66 = arith.constant 3 : index
    %c0_67 = arith.constant 0 : index
    %c0_68 = arith.constant 0 : index
    %105 = vector.load %arg10[%c0_65, %c3_66, %c0_67, %c0_68] : memref<1x4x16x8xbf16, #tpu.memory_space<vmem>>, vector<1x1x16x8xbf16>
    %106 = vector.shape_cast %105 : vector<1x1x16x8xbf16> to vector<16x8xbf16>
    %107 = vector.shape_cast %104 : vector<16x8xbf16> to vector<1x1x16x8xbf16>
    tpu.vector_store %arg10[%c0_65, %c3_66, %c0_67, %c0_68], %107 {strides = array<i32>} : memref<1x4x16x8xbf16, #tpu.memory_space<vmem>>, vector<1x1x16x8xbf16>,
    return
  }
  func.func @transform_0(%arg0: i32, %arg1: i32) -> (i32, i32, i32) {
    %c0_i32 = arith.constant 0 : i32
    %c0_i32_0 = arith.constant 0 : i32
    return %arg0, %arg1, %c0_i32 : i32, i32, i32
  }
  func.func @transform_1(%arg0: i32, %arg1: i32) -> (i32, i32) {
    %c0_i32 = arith.constant 0 : i32
    %c0_i32_0 = arith.constant 0 : i32
    %c0_i32_1 = arith.constant 0 : i32
    return %c0_i32, %c0_i32_0 : i32, i32
  }
  func.func @transform_2(%arg0: i32, %arg1: i32) -> (i32, i32) {
    %c0_i32 = arith.constant 0 : i32
    %c0_i32_0 = arith.constant 0 : i32
    %c0_i32_1 = arith.constant 0 : i32
    return %c0_i32, %c0_i32_0 : i32, i32
  }
  func.func @transform_3(%arg0: i32, %arg1: i32) -> (i32, i32) {
    %c0_i32 = arith.constant 0 : i32
    %c0_i32_0 = arith.constant 0 : i32
    %c0_i32_1 = arith.constant 0 : i32
    return %c0_i32, %c0_i32_0 : i32, i32
  }
  func.func @transform_4(%arg0: i32, %arg1: i32) -> (i32, i32) {
    %c0_i32 = arith.constant 0 : i32
    %c0_i32_0 = arith.constant 0 : i32
    %c0_i32_1 = arith.constant 0 : i32
    return %c0_i32, %c0_i32_0 : i32, i32
  }
  func.func @transform_5(%arg0: i32, %arg1: i32) -> (i32, i32, i32) {
    %c0_i32 = arith.constant 0 : i32
    %c0_i32_0 = arith.constant 0 : i32
    return %arg0, %arg1, %c0_i32 : i32, i32, i32
  }
  func.func @transform_6(%arg0: i32, %arg1: i32) -> (i32, i32, i32, i32) {
    %c0_i32 = arith.constant 0 : i32
    %c0_i32_0 = arith.constant 0 : i32
    %c0_i32_1 = arith.constant 0 : i32
    return %arg0, %c0_i32, %arg1, %c0_i32_0 : i32, i32, i32, i32
  }
  func.func @transform_7(%arg0: i32, %arg1: i32) -> (i32, i32, i32, i32) {
    %c0_i32 = arith.constant 0 : i32
    %c0_i32_0 = arith.constant 0 : i32
    %c0_i32_1 = arith.constant 0 : i32
    return %arg0, %c0_i32, %arg1, %c0_i32_0 : i32, i32, i32, i32
  }
  func.func @transform_8(%arg0: i32, %arg1: i32) -> (i32, i32, i32, i32) {
    %c0_i32 = arith.constant 0 : i32
    %c0_i32_0 = arith.constant 0 : i32
    %c0_i32_1 = arith.constant 0 : i32
    return %arg0, %c0_i32, %arg1, %c0_i32_0 : i32, i32, i32, i32
  }
}

</mosaic_0001>

<llo_original>
// kernel: tpu_custom_call.1
$region0: #{tpu_custom_call.1}
  #allocation0 [shape = 'u32[]', space=smem, size = 0x4, offset = 0x4, fixed_abs, tag = 'smem constant byte address 0x4 - core index']
  #allocation1 [shape = 'u32[144,128]{1,0:T(1,128)}', space=vmem, size = 0x12000, scoped, tag = 'internal scratch']
  #allocation17 [shape = 's32[]', space=sflag, size = 0x4, offset = 0, fixed_abs, tag = 'sflag constant byte address 0x0 - dummy sync flag']
  #allocation19 [shape = 's32[]', space=sflag, size = 0x4, offset = 0, fixed_abs, tag = 'sflag constant byte address 0x0 - dummy sync flag']
  #allocation21 [shape = 's32[]', space=sflag, size = 0x4, offset = 0, fixed_abs, tag = 'sflag constant byte address 0x0 - dummy sync flag']
  %s0 = inlined_call_operand.hbm [shape: f32[2,32,32], index: 0, kind: input, shape index: {}]
  %s1 = inlined_call_operand.hbm [shape: f32[1,32], index: 1, kind: input, shape index: {}]
  %s2 = inlined_call_operand.hbm [shape: f32[1,32], index: 2, kind: input, shape index: {}]
  %s3 = inlined_call_operand.hbm [shape: bf16[32,96], index: 3, kind: input, shape index: {}]
  %s4 = inlined_call_operand.hbm [shape: f32[1,96], index: 4, kind: input, shape index: {}]
  %s5 = inlined_call_operand.hbm [shape: f32[2,32,64], index: 5, kind: output, shape index: {0}]
  %s6 = inlined_call_operand.hbm [shape: bf16[2,4,32,8], index: 6, kind: output, shape index: {1}]
  %s7 = inlined_call_operand.hbm [shape: bf16[2,4,32,8], index: 7, kind: output, shape index: {2}]
  %s8 = inlined_call_operand.hbm [shape: bf16[2,4,32,8], index: 8, kind: output, shape index: {3}]
  %9 = xla_tuple %s5, %s6, %s7, %s8
  %s10 = sld [smem:[#allocation0]]
  $region97: #{tpu_custom_call.1} parent=0
    _
  %s12 = ssub.s32 1, %s10
  %s13 = scalar_select 0, %s12, %s10
  $region1: #{tpu_custom_call.1} parent=0
    #allocation2 [shape = 'u8[16384]{0}', space=vmem, size = 0x4000, scoped, tag = 'input window, operand 0']
    #allocation3 [shape = 's32[2]{0}', space=sflag, size = 0x8, scoped, tag = 'scoped memory for tpu_custom_call.1']
    #allocation4 [shape = 's32[2]{0}', space=sflag, size = 0x8, scoped, tag = 'scoped memory for tpu_custom_call.1']
    #allocation5 [shape = 'u8[512]{0}', space=vmem, size = 0x400, scoped, tag = 'input window, operand 1, single buffered']
    #allocation6 [shape = 's32[1]{0}', space=sflag, size = 0x4, scoped, tag = 'scoped memory for tpu_custom_call.1']
    #allocation7 [shape = 'u8[512]{0}', space=vmem, size = 0x400, scoped, tag = 'input window, operand 2, single buffered']
    #allocation8 [shape = 'u8[8192]{0}', space=vmem, size = 0x2000, scoped, tag = 'input window, operand 3, single buffered']
    #allocation9 [shape = 's32[1]{0}', space=sflag, size = 0x4, scoped, tag = 'scoped memory for tpu_custom_call.1']
    #allocation10 [shape = 'u8[512]{0}', space=vmem, size = 0x400, scoped, tag = 'input window, operand 4, single buffered']
    #allocation11 [shape = 'u8[16384]{0}', space=vmem, size = 0x4000, scoped, tag = 'output window, operand 0']
    #allocation12 [shape = 'u8[32768]{0}', space=vmem, size = 0x8000, scoped, tag = 'output window, operand 1']
    #allocation13 [shape = 's32[2]{0}', space=sflag, size = 0x8, scoped, tag = 'scoped memory for tpu_custom_call.1']
    #allocation14 [shape = 'u8[32768]{0}', space=vmem, size = 0x8000, scoped, tag = 'output window, operand 2']
    #allocation15 [shape = 'u8[32768]{0}', space=vmem, size = 0x8000, scoped, tag = 'output window, operand 3']
    #allocation16 [shape = 's32[2]{0}', space=sflag, size = 0x8, scoped, tag = 'scoped memory for tpu_custom_call.1']
    %14 = vsyncpa [#allocation3], 0
    %s15 = scalar_lea.sflag [#allocation3], 1
    %16 = vsyncpa %s15, 0
    %17 = vsyncpa [#allocation6], 0
    %18 = vsyncpa [#allocation9], 0
    %19 = vsyncpa [#allocation4], 0
    %s20 = scalar_lea.sflag [#allocation4], 1
    %21 = vsyncpa %s20, 0
    %22 = vsyncpa [#allocation13], 0
    %s23 = scalar_lea.sflag [#allocation13], 1
    %24 = vsyncpa %s23, 0
    %25 = vsyncpa [#allocation16], 0
    %s26 = scalar_lea.sflag [#allocation16], 1
    %27 = vsyncpa %s26, 0
    loop: start=0, step=1, limit=6
    $region2: #{tpu_custom_call.1} parent=1 // loop_pre_header
      _
    $region3: #{tpu_custom_call.1} parent=1 // loop_header
      %s29 = sphi 0, %s33
      %p30 = scmp.ge.s32.totalorder %s29, 6
      %s36 = sphi 0, %s48
      %s37 = sphi 0, %s44
      %s38 = sphi 0, %s36
      %s39 = sphi 0, %s37
      %s40 = sphi 0, %s38
      %s41 = sphi 0, %s39
      %s53 = sphi 0, %s55
      %s56 = sphi 0, %s53
      %s57 = sphi 0, %s56
      %s73 = sphi 0, %s57
      %s77 = sphi 0, %s77
      %s79 = sphi 0, %s77
      %s80 = sphi 0, %s79
      %s94 = sphi 0, %s80
      %s98 = sphi 0, %s98
      %s100 = sphi 0, %s98
      %s101 = sphi 0, %s100
      %s115 = sphi 0, %s101
      %s119 = sphi 0, %s119
      %s121 = sphi 0, %s119
      %s122 = sphi 0, %s121
      %s136 = sphi 0, %s122
      %s140 = sphi 0, %s140
      %s142 = sphi 0, %s140
      %s143 = sphi 0, %s142
      %s157 = sphi 0, %s143
      %s165 = sphi 0, %s167
      %s168 = sphi 0, %s165
      %s169 = sphi 0, %s168
      %s185 = sphi 0, %s169
      %s193 = sphi 0, %s195
      %s196 = sphi 0, %s193
      %s197 = sphi 0, %s196
      %s213 = sphi 0, %s197
      %s221 = sphi 0, %s223
      %s224 = sphi 0, %s221
      %s225 = sphi 0, %s224
      %s241 = sphi 0, %s225
      %s249 = sphi 0, %s251
      %s252 = sphi 0, %s249
      %s253 = sphi 0, %s252
      %s269 = sphi 0, %s253
    $region4: #{tpu_custom_call.1} parent=1 // loop_header_branch
      %32 = sbr.rel (%p30) target = $region8
    $region5: #{tpu_custom_call.1} parent=1 // loop_body
      %s34 = ssub.s32 %s29, 1
      %s35 = ssub.s32 %s29, 2
      %s42 = sadd.s32 1, %s37
      %p43 = scmp.ge.s32.totalorder %s42, 2
      %s44 = scalar_select %p43, 0, %s42
      %s45 = sadd.s32 1, %s36
      %s46 = scalar_select %p43, %s45, %s36
      %p47 = scmp.ge.s32.totalorder %s46, 2
      %s48 = scalar_select %p47, 0, %s46
      %s49 = ssub.s32 %s36, %s48
      %s50 = ssub.s32 %s37, %s44
      %s51 = sor.u32 %s49, %s50
      %p52 = scmp.eq.s32.totalorder %s51, 0
      %s54 = sadd.s32 %s53, 1
      %s55 = scalar_select %p52, %s53, %s54
      %p58 = pneg %p52
      %p59 = scmp.eq.s32.totalorder %s29, 3
      %p60 = por %p58, %p59
      %p61 = scmp.ne.s32.totalorder %s53, %s56
      %p62 = scmp.eq.s32.totalorder %s29, 0
      %p63 = por %p61, %p62
      %p64 = scmp.ne.s32.totalorder %s53, %s56
      %p65 = scmp.eq.s32.totalorder %s34, 3
      %p66 = por %p64, %p65
      %p67 = scmp.ne.s32.totalorder %s56, %s57
      %p68 = scmp.eq.s32.totalorder %s34, 0
      %p69 = por %p67, %p68
      %p70 = scmp.ne.s32.totalorder %s56, %s57
      %p71 = scmp.eq.s32.totalorder %s35, 3
      %p72 = por %p70, %p71
      %p74 = scmp.ne.s32.totalorder %s57, %s73
      %p75 = scmp.eq.s32.totalorder %s35, 0
      %p76 = por %p74, %p75
      %s78 = sadd.s32 %s77, 1
      %p81 = scmp.eq.s32.totalorder %s29, 3
      %p82 = scmp.ne.s32.totalorder %s77, %s79
      %p83 = scmp.eq.s32.totalorder %s29, 0
      %p84 = por %p82, %p83
      %p85 = scmp.ne.s32.totalorder %s77, %s79
      %p86 = scmp.eq.s32.totalorder %s34, 3
      %p87 = por %p85, %p86
      %p88 = scmp.ne.s32.totalorder %s79, %s80
      %p89 = scmp.eq.s32.totalorder %s34, 0
      %p90 = por %p88, %p89
      %p91 = scmp.ne.s32.totalorder %s79, %s80
      %p92 = scmp.eq.s32.totalorder %s35, 3
      %p93 = por %p91, %p92
      %p95 = scmp.ne.s32.totalorder %s80, %s94
      %p96 = scmp.eq.s32.totalorder %s35, 0
      %p97 = por %p95, %p96
      %s99 = sadd.s32 %s98, 1
      %p102 = scmp.eq.s32.totalorder %s29, 3
      %p103 = scmp.ne.s32.totalorder %s98, %s100
      %p104 = scmp.eq.s32.totalorder %s29, 0
      %p105 = por %p103, %p104
      %p106 = scmp.ne.s32.totalorder %s98, %s100
      %p107 = scmp.eq.s32.totalorder %s34, 3
      %p108 = por %p106, %p107
      %p109 = scmp.ne.s32.totalorder %s100, %s101
      %p110 = scmp.eq.s32.totalorder %s34, 0
      %p111 = por %p109, %p110
      %p112 = scmp.ne.s32.totalorder %s100, %s101
      %p113 = scmp.eq.s32.totalorder %s35, 3
      %p114 = por %p112, %p113
      %p116 = scmp.ne.s32.totalorder %s101, %s115
      %p117 = scmp.eq.s32.totalorder %s35, 0
      %p118 = por %p116, %p117
      %s120 = sadd.s32 %s119, 1
      %p123 = scmp.eq.s32.totalorder %s29, 3
      %p124 = scmp.ne.s32.totalorder %s119, %s121
      %p125 = scmp.eq.s32.totalorder %s29, 0
      %p126 = por %p124, %p125
      %p127 = scmp.ne.s32.totalorder %s119, %s121
      %p128 = scmp.eq.s32.totalorder %s34, 3
      %p129 = por %p127, %p128
      %p130 = scmp.ne.s32.totalorder %s121, %s122
      %p131 = scmp.eq.s32.totalorder %s34, 0
      %p132 = por %p130, %p131
      %p133 = scmp.ne.s32.totalorder %s121, %s122
      %p134 = scmp.eq.s32.totalorder %s35, 3
      %p135 = por %p133, %p134
      %p137 = scmp.ne.s32.totalorder %s122, %s136
      %p138 = scmp.eq.s32.totalorder %s35, 0
      %p139 = por %p137, %p138
      %s141 = sadd.s32 %s140, 1
      %p144 = scmp.eq.s32.totalorder %s29, 3
      %p145 = scmp.ne.s32.totalorder %s140, %s142
      %p146 = scmp.eq.s32.totalorder %s29, 0
      %p147 = por %p145, %p146
      %p148 = scmp.ne.s32.totalorder %s140, %s142
      %p149 = scmp.eq.s32.totalorder %s34, 3
      %p150 = por %p148, %p149
      %p151 = scmp.ne.s32.totalorder %s142, %s143
      %p152 = scmp.eq.s32.totalorder %s34, 0
      %p153 = por %p151, %p152
      %p154 = scmp.ne.s32.totalorder %s142, %s143
      %p155 = scmp.eq.s32.totalorder %s35, 3
      %p156 = por %p154, %p155
      %p158 = scmp.ne.s32.totalorder %s143, %s157
      %p159 = scmp.eq.s32.totalorder %s35, 0
      %p160 = por %p158, %p159
      %s161 = ssub.s32 %s36, %s48
      %s162 = ssub.s32 %s37, %s44
      %s163 = sor.u32 %s161, %s162
      %p164 = scmp.eq.s32.totalorder %s163, 0
      %s166 = sadd.s32 %s165, 1
      %s167 = scalar_select %p164, %s165, %s166
      %p170 = pneg %p164
      %p171 = scmp.eq.s32.totalorder %s29, 3
      %p172 = por %p170, %p171
      %p173 = scmp.ne.s32.totalorder %s165, %s168
      %p174 = scmp.eq.s32.totalorder %s29, 0
      %p175 = por %p173, %p174
      %p176 = scmp.ne.s32.totalorder %s165, %s168
      %p177 = scmp.eq.s32.totalorder %s34, 3
      %p178 = por %p176, %p177
      %p179 = scmp.ne.s32.totalorder %s168, %s169
      %p180 = scmp.eq.s32.totalorder %s34, 0
      %p181 = por %p179, %p180
      %p182 = scmp.ne.s32.totalorder %s168, %s169
      %p183 = scmp.eq.s32.totalorder %s35, 3
      %p184 = por %p182, %p183
      %p186 = scmp.ne.s32.totalorder %s169, %s185
      %p187 = scmp.eq.s32.totalorder %s35, 0
      %p188 = por %p186, %p187
      %s189 = ssub.s32 %s36, %s48
      %s190 = ssub.s32 %s37, %s44
      %s191 = sor.u32 %s189, %s190
      %p192 = scmp.eq.s32.totalorder %s191, 0
      %s194 = sadd.s32 %s193, 1
      %s195 = scalar_select %p192, %s193, %s194
      %p198 = pneg %p192
      %p199 = scmp.eq.s32.totalorder %s29, 3
      %p200 = por %p198, %p199
      %p201 = scmp.ne.s32.totalorder %s193, %s196
      %p202 = scmp.eq.s32.totalorder %s29, 0
      %p203 = por %p201, %p202
      %p204 = scmp.ne.s32.totalorder %s193, %s196
      %p205 = scmp.eq.s32.totalorder %s34, 3
      %p206 = por %p204, %p205
      %p207 = scmp.ne.s32.totalorder %s196, %s197
      %p208 = scmp.eq.s32.totalorder %s34, 0
      %p209 = por %p207, %p208
      %p210 = scmp.ne.s32.totalorder %s196, %s197
      %p211 = scmp.eq.s32.totalorder %s35, 3
      %p212 = por %p210, %p211
      %p214 = scmp.ne.s32.totalorder %s197, %s213
      %p215 = scmp.eq.s32.totalorder %s35, 0
      %p216 = por %p214, %p215
      %s217 = ssub.s32 %s36, %s48
      %s218 = ssub.s32 %s37, %s44
      %s219 = sor.u32 %s217, %s218
      %p220 = scmp.eq.s32.totalorder %s219, 0
      %s222 = sadd.s32 %s221, 1
      %s223 = scalar_select %p220, %s221, %s222
      %p226 = pneg %p220
      %p227 = scmp.eq.s32.totalorder %s29, 3
      %p228 = por %p226, %p227
      %p229 = scmp.ne.s32.totalorder %s221, %s224
      %p230 = scmp.eq.s32.totalorder %s29, 0
      %p231 = por %p229, %p230
      %p232 = scmp.ne.s32.totalorder %s221, %s224
      %p233 = scmp.eq.s32.totalorder %s34, 3
      %p234 = por %p232, %p233
      %p235 = scmp.ne.s32.totalorder %s224, %s225
      %p236 = scmp.eq.s32.totalorder %s34, 0
      %p237 = por %p235, %p236
      %p238 = scmp.ne.s32.totalorder %s224, %s225
      %p239 = scmp.eq.s32.totalorder %s35, 3
      %p240 = por %p238, %p239
      %p242 = scmp.ne.s32.totalorder %s225, %s241
      %p243 = scmp.eq.s32.totalorder %s35, 0
      %p244 = por %p242, %p243
      %s245 = ssub.s32 %s36, %s48
      %s246 = ssub.s32 %s37, %s44
      %s247 = sor.u32 %s245, %s246
      %p248 = scmp.eq.s32.totalorder %s247, 0
      %s250 = sadd.s32 %s249, 1
      %s251 = scalar_select %p248, %s249, %s250
      %p254 = pneg %p248
      %p255 = scmp.eq.s32.totalorder %s29, 3
      %p256 = por %p254, %p255
      %p257 = scmp.ne.s32.totalorder %s249, %s252
      %p258 = scmp.eq.s32.totalorder %s29, 0
      %p259 = por %p257, %p258
      %p260 = scmp.ne.s32.totalorder %s249, %s252
      %p261 = scmp.eq.s32.totalorder %s34, 3
      %p262 = por %p260, %p261
      %p263 = scmp.ne.s32.totalorder %s252, %s253
      %p264 = scmp.eq.s32.totalorder %s34, 0
      %p265 = por %p263, %p264
      %p266 = scmp.ne.s32.totalorder %s252, %s253
      %p267 = scmp.eq.s32.totalorder %s35, 3
      %p268 = por %p266, %p267
      %p270 = scmp.ne.s32.totalorder %s253, %s269
      %p271 = scmp.eq.s32.totalorder %s35, 0
      %p272 = por %p270, %p271
      %p273 = scmp.le.s32.totalorder 1, %s29
      %p274 = scmp.lt.s32.totalorder %s29, 5
      %p275 = pnand %p273, %p274
      %p276 = pneg %p275
      // Predicated region
      $region9: #{tpu_custom_call.1} parent=5 // pred_check
        _
      $region10: #{tpu_custom_call.1} parent=5 // pred_check_branch
        %278 = sbr.rel (%p275) target = $region12
      $region11: #{tpu_custom_call.1} parent=5 // pred_region
        %s279 = ssub.s32 %s29, 1
        // Predicated region
        $region13: #{tpu_custom_call.1} parent=11 // pred_check
          %p280 = pneg %p90
        $region14: #{tpu_custom_call.1} parent=11 // pred_check_branch
          %282 = sbr.rel (%p280) target = $region16
        $region15: #{tpu_custom_call.1} parent=11 // pred_region
          %s284 = ssub.s32 16, 16
          %285 = vsyncadd [#allocation6], %s284
          %s287 = sshll.u32 [#allocation5], 4
          %s288 = int_to_ptr.vmem [resolvable:$true] %s287
          %290 = dma.hbm_to_vmem [thread:$0]  %s1, 16, %s288, [#allocation6]
        $region16: #{tpu_custom_call.1} parent=11 // pred_fallthru
          _
        // Predicated region
        $region17: #{tpu_custom_call.1} parent=11 // pred_check
          %p291 = pneg %p111
        $region18: #{tpu_custom_call.1} parent=11 // pred_check_branch
          %293 = sbr.rel (%p291) target = $region20
        $region19: #{tpu_custom_call.1} parent=11 // pred_region
          %s295 = ssub.s32 16, 16
          %296 = vsyncadd [#allocation6], %s295
          %s298 = sshll.u32 [#allocation7], 4
          %s299 = int_to_ptr.vmem [resolvable:$true] %s298
          %301 = dma.hbm_to_vmem [thread:$0]  %s2, 16, %s299, [#allocation6]
        $region20: #{tpu_custom_call.1} parent=11 // pred_fallthru
          _
        // Predicated region
        $region21: #{tpu_custom_call.1} parent=11 // pred_check
          %p302 = pneg %p132
        $region22: #{tpu_custom_call.1} parent=11 // pred_check_branch
          %304 = sbr.rel (%p302) target = $region24
        $region23: #{tpu_custom_call.1} parent=11 // pred_region
          %s306 = ssub.s32 256, 256
          %307 = vsyncadd [#allocation9], %s306
          %s308 = sshll.u32 [#allocation8], 4
          %s309 = int_to_ptr.vmem [resolvable:$true] %s308
          %314 = dma.hbm_to_vmem [thread:$0]  %s3, 256, %s309, [#allocation9], 64, 64, 4
        $region24: #{tpu_custom_call.1} parent=11 // pred_fallthru
          _
        // Predicated region
        $region25: #{tpu_custom_call.1} parent=11 // pred_check
          %p315 = pneg %p153
        $region26: #{tpu_custom_call.1} parent=11 // pred_check_branch
          %317 = sbr.rel (%p315) target = $region28
        $region27: #{tpu_custom_call.1} parent=11 // pred_region
          %s319 = ssub.s32 16, 16
          %320 = vsyncadd [#allocation9], %s319
          %s322 = sshll.u32 [#allocation10], 4
          %s323 = int_to_ptr.vmem [resolvable:$true] %s322
          %325 = dma.hbm_to_vmem [thread:$0]  %s4, 16, %s323, [#allocation9]
        $region28: #{tpu_custom_call.1} parent=11 // pred_fallthru
          _
      $region12: #{tpu_custom_call.1} parent=5 // pred_fallthru
        _
      %p326 = scmp.lt.s32.totalorder %s29, 4
      // Predicated region
      $region29: #{tpu_custom_call.1} parent=5 // pred_check
        %p327 = pneg %p326
      $region30: #{tpu_custom_call.1} parent=5 // pred_check_branch
        %329 = sbr.rel (%p327) target = $region32
      $region31: #{tpu_custom_call.1} parent=5 // pred_region
        // Predicated region
        $region33: #{tpu_custom_call.1} parent=31 // pred_check
          %p330 = pneg %p63
        $region34: #{tpu_custom_call.1} parent=31 // pred_check_branch
          %332 = sbr.rel (%p330) target = $region36
        $region35: #{tpu_custom_call.1} parent=31 // pred_region
          %s333 = sand.u32 %s53, 1
          %s334 = scalar_lea.sflag [#allocation3], %s333
          %s335 = sand.u32 %s53, 1
          %s336 = smul.addr %s335, 16
          %s337 = scalar_lea.vmem [#allocation2], %s336
          %s338 = smul.u32 2, %s37
          %s340 = ssub.s32 256, 256
          %341 = vsyncadd %s334, %s340
          %s342 = smul.addr %s36, 4
          %s343 = sadd.s32 %s338, %s342
          %s344 = smul.addr %s343, 128
          %s345 = scalar_lea.hbm %s0, %s344
          %s346 = sshll.u32 %s337, 4
          %s347 = int_to_ptr.vmem [resolvable:$true] %s346
          %352 = dma.hbm_to_vmem [thread:$0]  %s345, 256, %s347, %s334, 128, 128, 8
        $region36: #{tpu_custom_call.1} parent=31 // pred_fallthru
          _
      $region32: #{tpu_custom_call.1} parent=5 // pred_fallthru
        _
      %p353 = scmp.le.s32.totalorder 1, %s29
      %p354 = scmp.lt.s32.totalorder %s29, 5
      %p355 = pnand %p353, %p354
      %p356 = pneg %p355
      // Predicated region
      $region37: #{tpu_custom_call.1} parent=5 // pred_check
        _
      $region38: #{tpu_custom_call.1} parent=5 // pred_check_branch
        %358 = sbr.rel (%p355) target = $region40
      $region39: #{tpu_custom_call.1} parent=5 // pred_region
        %s359 = ssub.s32 %s29, 1
        %s360 = sand.u32 %s56, 1
        %s361 = scalar_lea.sflag [#allocation3], %s360
        %s362 = sand.u32 %s56, 1
        %s363 = smul.addr %s362, 16
        %s364 = scalar_lea.vmem [#allocation2], %s363
        // Predicated region
        $region41: #{tpu_custom_call.1} parent=39 // pred_check
          %p365 = pneg %p69
        $region42: #{tpu_custom_call.1} parent=39 // pred_check_branch
          %367 = sbr.rel (%p365) target = $region44
        $region43: #{tpu_custom_call.1} parent=39 // pred_region
          %368 = dma.done %s361, 256
        $region44: #{tpu_custom_call.1} parent=39 // pred_fallthru
          _
        // Predicated region
        $region45: #{tpu_custom_call.1} parent=39 // pred_check
          %p369 = pneg %p90
        $region46: #{tpu_custom_call.1} parent=39 // pred_check_branch
          %371 = sbr.rel (%p369) target = $region48
        $region47: #{tpu_custom_call.1} parent=39 // pred_region
          %372 = dma.done [#allocation6], 16
        $region48: #{tpu_custom_call.1} parent=39 // pred_fallthru
          _
        // Predicated region
        $region49: #{tpu_custom_call.1} parent=39 // pred_check
          %p373 = pneg %p111
        $region50: #{tpu_custom_call.1} parent=39 // pred_check_branch
          %375 = sbr.rel (%p373) target = $region52
        $region51: #{tpu_custom_call.1} parent=39 // pred_region
          %376 = dma.done [#allocation6], 16
        $region52: #{tpu_custom_call.1} parent=39 // pred_fallthru
          _
        // Predicated region
        $region53: #{tpu_custom_call.1} parent=39 // pred_check
          %p377 = pneg %p132
        $region54: #{tpu_custom_call.1} parent=39 // pred_check_branch
          %379 = sbr.rel (%p377) target = $region56
        $region55: #{tpu_custom_call.1} parent=39 // pred_region
          %380 = dma.done [#allocation9], 256
        $region56: #{tpu_custom_call.1} parent=39 // pred_fallthru
          _
        // Predicated region
        $region57: #{tpu_custom_call.1} parent=39 // pred_check
          %p381 = pneg %p153
        $region58: #{tpu_custom_call.1} parent=39 // pred_check_branch
          %383 = sbr.rel (%p381) target = $region60
        $region59: #{tpu_custom_call.1} parent=39 // pred_region
          %384 = dma.done [#allocation9], 16
        $region60: #{tpu_custom_call.1} parent=39 // pred_fallthru
          _
        %s385 = sand.u32 %s56, 1
        %s386 = scalar_lea.sflag [#allocation3], %s385
        %s387 = sand.u32 %s56, 1
        %s388 = smul.addr %s387, 16
        %s389 = scalar_lea.vmem [#allocation2], %s388
        %p390 = pneg %p69
        %p391 = pneg %p66
        %p392 = pneg %p90
        %p393 = pneg %p87
        %p394 = pneg %p111
        %p395 = pneg %p108
        %p396 = pneg %p132
        %p397 = pneg %p129
        %p398 = pneg %p153
        %p399 = pneg %p150
        %p400 = pneg %p181
        %p401 = pneg %p178
        %s402 = sand.u32 %s168, 1
        %s403 = scalar_lea.sflag [#allocation4], %s402
        %s404 = sand.u32 %s168, 1
        %s405 = smul.addr %s404, 16
        %s406 = scalar_lea.vmem [#allocation11], %s405
        %p407 = pneg %p209
        %p408 = pneg %p206
        %s409 = sand.u32 %s34, 1
        %s410 = scalar_lea.sflag [#allocation13], %s409
        %s411 = sand.u32 %s196, 1
        %s412 = smul.addr %s411, 32
        %s413 = scalar_lea.vmem [#allocation12], %s412
        %p414 = pneg %p237
        %p415 = pneg %p234
        %s416 = sand.u32 %s34, 1
        %s417 = scalar_lea.sflag [#allocation13], %s416
        %s418 = sand.u32 %s224, 1
        %s419 = smul.addr %s418, 32
        %s420 = scalar_lea.vmem [#allocation14], %s419
        %p421 = pneg %p265
        %p422 = pneg %p262
        %s423 = sand.u32 %s252, 1
        %s424 = scalar_lea.sflag [#allocation16], %s423
        %s425 = sand.u32 %s252, 1
        %s426 = smul.addr %s425, 32
        %s427 = scalar_lea.vmem [#allocation15], %s426
        %s428 = smul.u32 2, %s39
        %s429 = smul.u32 2, %s39
        %s430 = smul.u32 2, %s39
        %s431 = smul.u32 2, %s39
        %s432 = smul.u32 2, %s39
        %v434 = vld [vmem:[%s364] sm:$0xff]
        %v435 = vld [vmem:[%s364 + $0x8] sm:$0xff]
        %v436 = vld [vmem:[#allocation5] sm:$0x1]
        %v437 = vld [vmem:[#allocation7] sm:$0x1]
        %vm438 = vcmask 261120
        %v439 = vsel %vm438, %v434, 0.0
        %440 = vadd.xlane.f32.xlu0 %v439
        %v441 = vpop.xlane.xlu0 %440
        %v442 = vsel %vm438, %v435, 0.0
        %443 = vadd.xlane.f32.xlu0 %v442
        %v444 = vpop.xlane.xlu0 %443
        %v445 = vrcp.pop 32.0
        %v446 = vmul.f32 %v441, %v445
        %v447 = vmul.f32 %v444, %v445
        %v448 = vsub.f32 %v434, %v446
        %v449 = vsub.f32 %v435, %v447
        %v450 = vmul.f32 %v448, %v448
        %v451 = vmul.f32 %v449, %v449
        %v452 = vsel %vm438, %v450, 0.0
        %453 = vadd.xlane.f32.xlu0 %v452
        %v454 = vpop.xlane.xlu0 %453
        %v455 = vsel %vm438, %v451, 0.0
        %456 = vadd.xlane.f32.xlu0 %v455
        %v457 = vpop.xlane.xlu0 %456
        %v458 = vmul.f32 %v454, %v445
        %v459 = vmul.f32 %v457, %v445
        %v460 = vadd.f32 %v458, 1e-05
        %v461 = vadd.f32 %v459, 1e-05
        %v462 = vrsqrt.pop %v460
        %v463 = vrsqrt.pop %v461
        %v464 = vmul.f32 %v448, %v462
        %v465 = vmul.f32 %v449, %v463
        %v467 = vlaneseq
        %v468 = vshrl.u32 %v467, 7
        %v469 = vsub.s32 0, %v468
        %v470 = vrot.slane %v436, %v469
        %v472 = vmul.f32 %v464, %v470
        %v473 = vmul.f32 %v465, %v470
        %v475 = vlaneseq
        %v476 = vshrl.u32 %v475, 7
        %v477 = vsub.s32 0, %v476
        %v478 = vrot.slane %v437, %v477
        %v480 = vadd.f32 %v472, %v478
        %v481 = vadd.f32 %v473, %v478
        %v482 = vpack.c.bf16 %v481, %v480
        %v483 = vld [vmem:[#allocation8] sm:$0xf]
        %v484 = vld [vmem:[#allocation8 + $0x4] sm:$0xf]
        %v485 = vld [vmem:[#allocation8 + $0x8] sm:$0xf]
        %v486 = vld [vmem:[#allocation8 + $0xc] sm:$0xf]
        %v487 = vld [vmem:[#allocation10] sm:$0x1]
        %v489 = vlaneseq
        %v490 = vshrl.u32 %v489, 7
        %v491 = vsub.s32 0, %v490
        %v492 = vrot.slane %v487, %v491
        %v498 = vunpack.c.l.b16 %v483
        %v499 = vunpack.c.l.b16 %v484
        %v500 = vunpack.c.l.b16 %v485
        %v501 = vunpack.c.l.b16 %v486
        %v502 = vpack.c.b16 %v499, %v498
        %v503 = vpack.c.b16 %v501, %v500
        %v507 = vsel %vm438, %v482, 0
        %509 = vmatprep.subr.bf16.mxu0 0
        %510 = vmatpush1.bf16.msra.mxu0 %v502
        %511 = vmatprep.subr.bf16.mxu0 0
        %512 = vmatpush1.bf16.msra.mxu0 %v503
        %513 = vmatprep.subr.bf16.mxu0 0
        %514 = vmatpush1.bf16.msra.mxu0 0
        %515 = vmatprep.subr.bf16.mxu0 0
        %516 = vmatpush1.bf16.msra.mxu0 0
        %517 = vmatprep.subr.bf16.mxu0 0
        %518 = vmatpush1.bf16.msra.mxu0 0
        %519 = vmatprep.subr.bf16.mxu0 0
        %520 = vmatpush1.bf16.msra.mxu0 0
        %521 = vmatprep.subr.bf16.mxu0 0
        %522 = vmatpush1.bf16.msra.mxu0 0
        %523 = vmatprep.subr.bf16.mxu0 0
        %524 = vmatpush1.bf16.msra.mxu0 0
        %525 = vmatprep.subr.bf16.mxu0 0
        %526 = vmatpush1.bf16.msra.mxu0 0
        %527 = vmatprep.subr.bf16.mxu0 0
        %528 = vmatpush1.bf16.msra.mxu0 0
        %529 = vmatprep.subr.bf16.mxu0 0
        %530 = vmatpush1.bf16.msra.mxu0 0
        %531 = vmatprep.subr.bf16.mxu0 0
        %532 = vmatpush1.bf16.msra.mxu0 0
        %533 = vmatprep.subr.bf16.mxu0 0
        %534 = vmatpush1.bf16.msra.mxu0 0
        %535 = vmatprep.subr.bf16.mxu0 0
        %536 = vmatpush1.bf16.msra.mxu0 0
        %537 = vmatprep.subr.bf16.mxu0 0
        %538 = vmatpush1.bf16.msra.mxu0 0
        %539 = vmatprep.subr.bf16.mxu0 0
        %540 = vmatpush1.bf16.msra.mxu0 0
        %541 = vmatprep.mubr.bf16.mxu0 0
        %542 = vmatmul.mubr.bf16.gmra.mrb[0].mxu0 %v507
        %v543 = vpop.f32.mrb[0].mxu0
        %v544 = vadd.f32 %v492, %v543
        %v545 = vpop.f32.mrb[0].mxu0
        %v546 = vpop.f32.mrb[0].mxu0
        %v547 = vadd.f32 %v492, %v546
        %v548 = vpop.f32.mrb[0].mxu0
        %549 = vdwg.mxu0
        %552 = vrot.lane.b32.xlu0 %v544, 96
        %v553 = vpop.permute.xlu0 %552
        %554 = vrot.lane.b32.xlu0 %v547, 96
        %v555 = vpop.permute.xlu0 %554
        %558 = vst.msk [vmem:[%s406] sm:$0xff] %vm438, %v553
        %559 = vst.msk [vmem:[%s406 + $0x8] sm:$0xff] %vm438, %v555
        %vm560 = vcmask 523520
        %561 = vst.msk [vmem:[%s406] sm:$0xff] %vm560, %v553
        %562 = vst.msk [vmem:[%s406 + $0x8] sm:$0xff] %vm560, %v555
        %v563 = vmul.f32 %v544, 0.35355338
        %v564 = vmul.f32 %v547, 0.35355338
        %v565 = vpack.c.bf16 %v564, %v563
        %v567 = vunpack.c.l.b16 %v565
        %v568 = vunpack.c.h.b16 %v565
        %v569 = vpack.c.b16 %v567, %v567
        %v570 = vpack.c.b16 %v568, %v568
        %vm573 = vcmask 60416
        %574 = vst.msk [vmem:[%s413] sm:$0xf] %vm573, %v569
        %575 = vst.msk [vmem:[%s413 + $0x4] sm:$0xf] %vm573, %v570
        %v576 = vpack.c.bf16 %v547, %v544
        %v578 = vunpack.c.l.b16 %v576
        %v579 = vunpack.c.h.b16 %v576
        %v580 = vpack.c.b16 %v578, %v578
        %v581 = vpack.c.b16 %v579, %v579
        %582 = vrot.lane.b32.xlu0 %v580, 96
        %v583 = vpop.permute.xlu0 %582
        %584 = vrot.lane.b32.xlu0 %v581, 96
        %v585 = vpop.permute.xlu0 %584
        %588 = vst.msk [vmem:[%s420] sm:$0xf] %vm573, %v583
        %589 = vst.msk [vmem:[%s420 + $0x4] sm:$0xf] %vm573, %v585
        %590 = vrot.lane.b32.xlu0 %v580, 64
        %v591 = vpop.permute.xlu0 %590
        %592 = vrot.lane.b32.xlu0 %v581, 64
        %v593 = vpop.permute.xlu0 %592
        %596 = vst.msk [vmem:[%s427] sm:$0xf] %vm573, %v591
        %597 = vst.msk [vmem:[%s427 + $0x4] sm:$0xf] %vm573, %v593
        %598 = vrot.lane.b32.xlu0 %v569, 120
        %v599 = vpop.permute.xlu0 %598
        %600 = vrot.lane.b32.xlu0 %v570, 120
        %v601 = vpop.permute.xlu0 %600
        %s604 = scalar_lea.vmem %s413, 8 [#allocation12]
        %605 = vst.msk [vmem:[%s604] sm:$0xf] %vm573, %v599
        %606 = vst.msk [vmem:[%s604 + $0x4] sm:$0xf] %vm573, %v601
        %607 = vrot.lane.b32.xlu0 %v580, 88
        %v608 = vpop.permute.xlu0 %607
        %609 = vrot.lane.b32.xlu0 %v581, 88
        %v610 = vpop.permute.xlu0 %609
        %s613 = scalar_lea.vmem %s420, 8 [#allocation14]
        %614 = vst.msk [vmem:[%s613] sm:$0xf] %vm573, %v608
        %615 = vst.msk [vmem:[%s613 + $0x4] sm:$0xf] %vm573, %v610
        %616 = vrot.lane.b32.xlu0 %v580, 56
        %v617 = vpop.permute.xlu0 %616
        %618 = vrot.lane.b32.xlu0 %v581, 56
        %v619 = vpop.permute.xlu0 %618
        %s622 = scalar_lea.vmem %s427, 8 [#allocation15]
        %623 = vst.msk [vmem:[%s622] sm:$0xf] %vm573, %v617
        %624 = vst.msk [vmem:[%s622 + $0x4] sm:$0xf] %vm573, %v619
        %625 = vrot.lane.b32.xlu0 %v569, 112
        %v626 = vpop.permute.xlu0 %625
        %627 = vrot.lane.b32.xlu0 %v570, 112
        %v628 = vpop.permute.xlu0 %627
        %s631 = scalar_lea.vmem %s413, 16 [#allocation12]
        %632 = vst.msk [vmem:[%s631] sm:$0xf] %vm573, %v626
        %633 = vst.msk [vmem:[%s631 + $0x4] sm:$0xf] %vm573, %v628
        %634 = vrot.lane.b32.xlu0 %v580, 80
        %v635 = vpop.permute.xlu0 %634
        %636 = vrot.lane.b32.xlu0 %v581, 80
        %v637 = vpop.permute.xlu0 %636
        %s640 = scalar_lea.vmem %s420, 16 [#allocation14]
        %641 = vst.msk [vmem:[%s640] sm:$0xf] %vm573, %v635
        %642 = vst.msk [vmem:[%s640 + $0x4] sm:$0xf] %vm573, %v637
        %643 = vrot.lane.b32.xlu0 %v580, 48
        %v644 = vpop.permute.xlu0 %643
        %645 = vrot.lane.b32.xlu0 %v581, 48
        %v646 = vpop.permute.xlu0 %645
        %s649 = scalar_lea.vmem %s427, 16 [#allocation15]
        %650 = vst.msk [vmem:[%s649] sm:$0xf] %vm573, %v644
        %651 = vst.msk [vmem:[%s649 + $0x4] sm:$0xf] %vm573, %v646
        %652 = vrot.lane.b32.xlu0 %v569, 104
        %v653 = vpop.permute.xlu0 %652
        %654 = vrot.lane.b32.xlu0 %v570, 104
        %v655 = vpop.permute.xlu0 %654
        %s658 = scalar_lea.vmem %s413, 24 [#allocation12]
        %659 = vst.msk [vmem:[%s658] sm:$0xf] %vm573, %v653
        %660 = vst.msk [vmem:[%s658 + $0x4] sm:$0xf] %vm573, %v655
        %661 = vrot.lane.b32.xlu0 %v580, 72
        %v662 = vpop.permute.xlu0 %661
        %663 = vrot.lane.b32.xlu0 %v581, 72
        %v664 = vpop.permute.xlu0 %663
        %s667 = scalar_lea.vmem %s420, 24 [#allocation14]
        %668 = vst.msk [vmem:[%s667] sm:$0xf] %vm573, %v662
        %669 = vst.msk [vmem:[%s667 + $0x4] sm:$0xf] %vm573, %v664
        %670 = vrot.lane.b32.xlu0 %v580, 40
        %v671 = vpop.permute.xlu0 %670
        %672 = vrot.lane.b32.xlu0 %v581, 40
        %v673 = vpop.permute.xlu0 %672
        %s676 = scalar_lea.vmem %s427, 24 [#allocation15]
        %677 = vst.msk [vmem:[%s676] sm:$0xf] %vm573, %v671
        %678 = vst.msk [vmem:[%s676 + $0x4] sm:$0xf] %vm573, %v673
        %s679 = sand.u32 %s168, 1
        %s680 = scalar_lea.sflag [#allocation4], %s679
        %s681 = sand.u32 %s168, 1
        %s682 = smul.addr %s681, 16
        %s683 = scalar_lea.vmem [#allocation11], %s682
        %s684 = sand.u32 %s34, 1
        %s685 = scalar_lea.sflag [#allocation13], %s684
        %s686 = sand.u32 %s196, 1
        %s687 = smul.addr %s686, 32
        %s688 = scalar_lea.vmem [#allocation12], %s687
        %s689 = sand.u32 %s34, 1
        %s690 = scalar_lea.sflag [#allocation13], %s689
        %s691 = sand.u32 %s224, 1
        %s692 = smul.addr %s691, 32
        %s693 = scalar_lea.vmem [#allocation14], %s692
        %s694 = sand.u32 %s252, 1
        %s695 = scalar_lea.sflag [#allocation16], %s694
        %s696 = sand.u32 %s252, 1
        %s697 = smul.addr %s696, 32
        %s698 = scalar_lea.vmem [#allocation15], %s697
        // Predicated region
        $region61: #{tpu_custom_call.1} parent=39 // pred_check
          %p699 = pneg %p178
        $region62: #{tpu_custom_call.1} parent=39 // pred_check_branch
          %701 = sbr.rel (%p699) target = $region64
        $region63: #{tpu_custom_call.1} parent=39 // pred_region
          %s702 = smul.u32 2, %s39
          %s704 = ssub.s32 256, 256
          %705 = vsyncadd %s680, %s704
          %s706 = smul.addr %s38, 4
          %s707 = sadd.s32 %s702, %s706
          %s708 = smul.addr %s707, 128
          %s709 = scalar_lea.hbm %s5, %s708
          %s710 = sshll.u32 %s683, 4
          %s711 = int_to_ptr.vmem [resolvable:$true] %s710
          %716 = dma.vmem_to_hbm [thread:$0]  %s711, 256, %s709, %s680, 128, 128, 8
        $region64: #{tpu_custom_call.1} parent=39 // pred_fallthru
          _
        // Predicated region
        $region65: #{tpu_custom_call.1} parent=39 // pred_check
          %p717 = pneg %p206
        $region66: #{tpu_custom_call.1} parent=39 // pred_check_branch
          %719 = sbr.rel (%p717) target = $region68
        $region67: #{tpu_custom_call.1} parent=39 // pred_region
          #allocation18 [shape = 'u32[6]{0}', space=smem, size = 0x18, scoped, tag = 'DMA stride descriptor']
          %s720 = smul.u32 2, %s39
          %s722 = ssub.s32 512, 512
          %723 = vsyncadd %s685, %s722
          %s724 = smul.addr %s38, 16
          %s725 = sadd.s32 %s720, %s724
          %s726 = smul.addr %s725, 64
          %s727 = scalar_lea.hbm %s6, %s726
          %s729 = sshll.u32 1, 14
          %s730 = sxor.u32 4294967295, %s729
          %s733 = sshll.u32 7, 18
          %s734 = sxor.u32 4294967295, %s733
          %s735 = sand.u32 0, %s734
          %s737 = sor.u32 %s735, 0
          %s739 = sshll.u32 3, 24
          %s740 = sxor.u32 4294967295, %s739
          %s741 = sand.u32 %s737, %s740
          %s743 = sor.u32 %s741, 0
          %s744 = sshll.u32 %s688, 4
          %s745 = int_to_ptr.vmem [resolvable:$true] %s744
          %751 = sst [smem:[#allocation18]] 128
          %s752 = scalar_lea.smem [#allocation18], 1
          %753 = sst [smem:[%s752]] 256
          %s754 = scalar_lea.smem [#allocation18], 2
          %755 = sst [smem:[%s754]] 2
          %s756 = scalar_lea.smem [#allocation18], 3
          %757 = sst [smem:[%s756]] 64
          %s758 = scalar_lea.smem [#allocation18], 4
          %759 = sst [smem:[%s758]] 64
          %s760 = scalar_lea.smem [#allocation18], 5
          %761 = sst [smem:[%s760]] 4
          %763 = dma.general %s745, 512, %s727, %s685, [#allocation17], [#allocation18], %s743, 0
        $region68: #{tpu_custom_call.1} parent=39 // pred_fallthru
          _
        // Predicated region
        $region69: #{tpu_custom_call.1} parent=39 // pred_check
          %p764 = pneg %p234
        $region70: #{tpu_custom_call.1} parent=39 // pred_check_branch
          %766 = sbr.rel (%p764) target = $region72
        $region71: #{tpu_custom_call.1} parent=39 // pred_region
          #allocation20 [shape = 'u32[6]{0}', space=smem, size = 0x18, scoped, tag = 'DMA stride descriptor']
          %s767 = smul.u32 2, %s39
          %s769 = ssub.s32 512, 512
          %770 = vsyncadd %s690, %s769
          %s771 = smul.addr %s38, 16
          %s772 = sadd.s32 %s767, %s771
          %s773 = smul.addr %s772, 64
          %s774 = scalar_lea.hbm %s7, %s773
          %s776 = sshll.u32 1, 14
          %s777 = sxor.u32 4294967295, %s776
          %s780 = sshll.u32 7, 18
          %s781 = sxor.u32 4294967295, %s780
          %s782 = sand.u32 0, %s781
          %s784 = sor.u32 %s782, 0
          %s786 = sshll.u32 3, 24
          %s787 = sxor.u32 4294967295, %s786
          %s788 = sand.u32 %s784, %s787
          %s790 = sor.u32 %s788, 0
          %s791 = sshll.u32 %s693, 4
          %s792 = int_to_ptr.vmem [resolvable:$true] %s791
          %798 = sst [smem:[#allocation20]] 128
          %s799 = scalar_lea.smem [#allocation20], 1
          %800 = sst [smem:[%s799]] 256
          %s801 = scalar_lea.smem [#allocation20], 2
          %802 = sst [smem:[%s801]] 2
          %s803 = scalar_lea.smem [#allocation20], 3
          %804 = sst [smem:[%s803]] 64
          %s805 = scalar_lea.smem [#allocation20], 4
          %806 = sst [smem:[%s805]] 64
          %s807 = scalar_lea.smem [#allocation20], 5
          %808 = sst [smem:[%s807]] 4
          %810 = dma.general %s792, 512, %s774, %s690, [#allocation19], [#allocation20], %s790, 0
        $region72: #{tpu_custom_call.1} parent=39 // pred_fallthru
          _
        // Predicated region
        $region73: #{tpu_custom_call.1} parent=39 // pred_check
          %p811 = pneg %p262
        $region74: #{tpu_custom_call.1} parent=39 // pred_check_branch
          %813 = sbr.rel (%p811) target = $region76
        $region75: #{tpu_custom_call.1} parent=39 // pred_region
          #allocation22 [shape = 'u32[6]{0}', space=smem, size = 0x18, scoped, tag = 'DMA stride descriptor']
          %s814 = smul.u32 2, %s39
          %s816 = ssub.s32 512, 512
          %817 = vsyncadd %s695, %s816
          %s818 = smul.addr %s38, 16
          %s819 = sadd.s32 %s814, %s818
          %s820 = smul.addr %s819, 64
          %s821 = scalar_lea.hbm %s8, %s820
          %s823 = sshll.u32 1, 14
          %s824 = sxor.u32 4294967295, %s823
          %s827 = sshll.u32 7, 18
          %s828 = sxor.u32 4294967295, %s827
          %s829 = sand.u32 0, %s828
          %s831 = sor.u32 %s829, 0
          %s833 = sshll.u32 3, 24
          %s834 = sxor.u32 4294967295, %s833
          %s835 = sand.u32 %s831, %s834
          %s837 = sor.u32 %s835, 0
          %s838 = sshll.u32 %s698, 4
          %s839 = int_to_ptr.vmem [resolvable:$true] %s838
          %845 = sst [smem:[#allocation22]] 128
          %s846 = scalar_lea.smem [#allocation22], 1
          %847 = sst [smem:[%s846]] 256
          %s848 = scalar_lea.smem [#allocation22], 2
          %849 = sst [smem:[%s848]] 2
          %s850 = scalar_lea.smem [#allocation22], 3
          %851 = sst [smem:[%s850]] 64
          %s852 = scalar_lea.smem [#allocation22], 4
          %853 = sst [smem:[%s852]] 64
          %s854 = scalar_lea.smem [#allocation22], 5
          %855 = sst [smem:[%s854]] 4
          %857 = dma.general %s839, 512, %s821, %s695, [#allocation21], [#allocation22], %s837, 0
        $region76: #{tpu_custom_call.1} parent=39 // pred_fallthru
          _
      $region40: #{tpu_custom_call.1} parent=5 // pred_fallthru
        _
      %p858 = scmp.le.s32.totalorder 2, %s29
      // Predicated region
      $region77: #{tpu_custom_call.1} parent=5 // pred_check
        %p859 = pneg %p858
      $region78: #{tpu_custom_call.1} parent=5 // pred_check_branch
        %861 = sbr.rel (%p859) target = $region80
      $region79: #{tpu_custom_call.1} parent=5 // pred_region
        %s862 = ssub.s32 %s29, 2
        // Predicated region
        $region81: #{tpu_custom_call.1} parent=79 // pred_check
          %p863 = pneg %p184
        $region82: #{tpu_custom_call.1} parent=79 // pred_check_branch
          %865 = sbr.rel (%p863) target = $region84
        $region83: #{tpu_custom_call.1} parent=79 // pred_region
          %s866 = sand.u32 %s169, 1
          %s867 = scalar_lea.sflag [#allocation4], %s866
          %s868 = sand.u32 %s169, 1
          %s869 = smul.addr %s868, 16
          %s870 = scalar_lea.vmem [#allocation11], %s869
          %871 = dma.done %s867, 256
        $region84: #{tpu_custom_call.1} parent=79 // pred_fallthru
          _
        // Predicated region
        $region85: #{tpu_custom_call.1} parent=79 // pred_check
          %p872 = pneg %p212
        $region86: #{tpu_custom_call.1} parent=79 // pred_check_branch
          %874 = sbr.rel (%p872) target = $region88
        $region87: #{tpu_custom_call.1} parent=79 // pred_region
          %s875 = sand.u32 %s35, 1
          %s876 = scalar_lea.sflag [#allocation13], %s875
          %s877 = sand.u32 %s197, 1
          %s878 = smul.addr %s877, 32
          %s879 = scalar_lea.vmem [#allocation12], %s878
          %880 = dma.done %s876, 512
        $region88: #{tpu_custom_call.1} parent=79 // pred_fallthru
          _
        // Predicated region
        $region89: #{tpu_custom_call.1} parent=79 // pred_check
          %p881 = pneg %p240
        $region90: #{tpu_custom_call.1} parent=79 // pred_check_branch
          %883 = sbr.rel (%p881) target = $region92
        $region91: #{tpu_custom_call.1} parent=79 // pred_region
          %s884 = sand.u32 %s35, 1
          %s885 = scalar_lea.sflag [#allocation13], %s884
          %s886 = sand.u32 %s225, 1
          %s887 = smul.addr %s886, 32
          %s888 = scalar_lea.vmem [#allocation14], %s887
          %889 = dma.done %s885, 512
        $region92: #{tpu_custom_call.1} parent=79 // pred_fallthru
          _
        // Predicated region
        $region93: #{tpu_custom_call.1} parent=79 // pred_check
          %p890 = pneg %p268
        $region94: #{tpu_custom_call.1} parent=79 // pred_check_branch
          %892 = sbr.rel (%p890) target = $region96
        $region95: #{tpu_custom_call.1} parent=79 // pred_region
          %s893 = sand.u32 %s253, 1
          %s894 = scalar_lea.sflag [#allocation16], %s893
          %s895 = sand.u32 %s253, 1
          %s896 = smul.addr %s895, 32
          %s897 = scalar_lea.vmem [#allocation15], %s896
          %898 = dma.done %s894, 512
        $region96: #{tpu_custom_call.1} parent=79 // pred_fallthru
          _
      $region80: #{tpu_custom_call.1} parent=5 // pred_fallthru
        _
    $region6: #{tpu_custom_call.1} parent=1 // loop_footer
      %s33 = sadd.s32 1, %s29
    $region7: #{tpu_custom_call.1} parent=1 // loop_footer_branch
      %28 = sbr.rel target = $region3
    $region8: #{tpu_custom_call.1} parent=1 // loop_exit
      _
    %899 = vsyncpa [#allocation3], 1
    %s900 = scalar_lea.sflag [#allocation3], 1
    %901 = vsyncpa %s900, 1
    %902 = vsyncpa [#allocation6], 1
    %903 = vsyncpa [#allocation9], 1
    %904 = vsyncpa [#allocation4], 1
    %s905 = scalar_lea.sflag [#allocation4], 1
    %906 = vsyncpa %s905, 1
    %907 = vsyncpa [#allocation13], 1
    %s908 = scalar_lea.sflag [#allocation13], 1
    %909 = vsyncpa %s908, 1
    %910 = vsyncpa [#allocation16], 1
    %s911 = scalar_lea.sflag [#allocation16], 1
    %912 = vsyncpa %s911, 1

</llo_original>
